<compile_context>
chip_gen: v5e
topology: v5e:2x2
jax: 0.10.0
libtpu: 0.0.40
codegen_flags: <defaults>
</compile_context>

<pallas_src>
import functools

import jax
import jax.numpy as jnp
from jax.experimental import pallas as pl
from jax.experimental.pallas import tpu as pltpu


# --------------------------------------------------------------------------------------
# Kernels
# --------------------------------------------------------------------------------------

def ffn_kernel_resident(x_ref, w1_ref, b1_ref, w2_ref, b2_ref, o_ref, *, precision):
    """1-D grid over row tiles; full W1/W2 blocks stay VMEM-resident (constant index
    maps -> streamed from HBM once for the whole kernel)."""
    h = jnp.dot(x_ref[...], w1_ref[...],
                preferred_element_type=jnp.float32, precision=precision)
    h = jnp.maximum(h + b1_ref[...].astype(jnp.float32), 0.0)
    # Dropout == identity (eval mode).
    o = jnp.dot(h.astype(w2_ref.dtype), w2_ref[...],
                preferred_element_type=jnp.float32, precision=precision)
    o_ref[...] = (o + b2_ref[...].astype(jnp.float32)).astype(o_ref.dtype)


def ffn_kernel_slabbed(x_ref, w1_ref, b1_ref, w2_ref, b2_ref, o_ref, acc_ref, *,
                       precision):
    """2-D grid (row tiles x d_ff slabs); f32 accumulator resident across the
    'arbitrary' d_ff axis, b2 folded into the init, output stored once."""
    j = pl.program_id(1)

    @pl.when(j == 0)
    def _():
        acc_ref[...] = jnp.broadcast_to(
            b2_ref[...].astype(jnp.float32), acc_ref.shape)

    h = jnp.dot(x_ref[...], w1_ref[...],
                preferred_element_type=jnp.float32, precision=precision)
    h = jnp.maximum(h + b1_ref[...].astype(jnp.float32), 0.0)
    # Dropout == identity (eval mode). ReLU is elementwise -> slab-wise accumulation
    # over d_ff is exact.
    acc_ref[...] += jnp.dot(h.astype(w2_ref.dtype), w2_ref[...],
                            preferred_element_type=jnp.float32, precision=precision)

    @pl.when(j == pl.num_programs(1) - 1)
    def _():
        o_ref[...] = acc_ref[...].astype(o_ref.dtype)


# --------------------------------------------------------------------------------------
# Tiling helpers
# --------------------------------------------------------------------------------------

def _pick_tile(dim, preferred, aligns):
    """Largest divisor of `dim` that is <= `preferred` and a multiple of one of
    `aligns` (tried most-preferred first); falls back to the full `dim`."""
    if dim <= preferred:
        return dim
    for align in aligns:
        t = (preferred // align) * align
        while t >= align:
            if dim % t == 0:
                return t
            t -= align
    return dim


def _shrink(dim, cur, aligns):
    """Next smaller aligned divisor of `dim` (roughly half of `cur`), or `cur`."""
    target = cur // 2
    if target < 1:
        return cur
    cand = _pick_tile(dim, target, aligns)
    return cand if (cand < cur and dim % cand == 0) else cur


def _vmem_budget_bytes():
    """Generation-aware VMEM budget: physical capacity minus headroom for Mosaic's own
    scratch (≈102 MiB on 128 MiB parts, ≈48 MiB on v7x's 64 MiB/TC)."""
    try:
        cap = int(pltpu.get_tpu_info().vmem_capacity_bytes)
    except Exception:  # pragma: no cover - conservative fallback (v7x-sized)
        cap = 64 * 1024 * 1024
    return max(min(cap - 16 * 1024 * 1024, int(cap * 0.8)), 16 * 1024 * 1024)


# --------------------------------------------------------------------------------------
# Wrapper
# --------------------------------------------------------------------------------------

def feed_forward_block(x, w1, b1, w2, b2, *, tm=None, tf=None, mxu_dtype=None,
                       weight_buffers=2):
    """x: (batch, seq, d_model) -> (batch, seq, d_model).

    tm:  row tile over batch*seq (default: generation-dependent, MXU/dtype aligned).
    tf:  d_ff slab for the slabbed path (passing it forces the slabbed path).
    mxu_dtype: dtype for MXU inputs (e.g. jnp.bfloat16, recommended in production);
               accumulation stays f32. Store params pre-cast to avoid per-call casts.
    weight_buffers: pipeline depth for the W1/W2 slabs (slabbed path only); set 3 on
               128 MiB parts if a trace shows exposed weight DMA.
    """
    batch, seq, d_model = x.shape
    d_ff = w1.shape[1]
    M = batch * seq
    out_dtype = x.dtype

    compute_dtype = jnp.dtype(mxu_dtype) if mxu_dtype is not None else jnp.dtype(x.dtype)
    # Only cast when dtypes differ; pre-cast params (bf16) make these no-ops.
    if x.dtype != compute_dtype:
        x = x.astype(compute_dtype)
    if w1.dtype != compute_dtype:
        w1 = w1.astype(compute_dtype)
    if w2.dtype != compute_dtype:
        w2 = w2.astype(compute_dtype)

    in_item = compute_dtype.itemsize
    out_item = jnp.dtype(out_dtype).itemsize

    # f32 path: HIGHEST precision for parity with the PyTorch f32 module; narrower
    # dtypes use the default single-pass MXU path.
    precision = (jax.lax.Precision.HIGHEST
                 if compute_dtype == jnp.dtype(jnp.float32) else None)

    budget = _vmem_budget_bytes()
    big_vmem = budget >= 80 * 1024 * 1024  # v5e/v6e-class (128 MiB physical VMEM)

    # Row-tile alignment: 8 sublanes (f32), 16 (bf16), 32 (1-byte dtypes); prefer
    # multiples of 256 (v6e/v7x 256-wide MXU), then 128 (v5e 4x128 MXU).
    base_align = max(8, 32 // in_item)
    row_aligns = [a for a in (256, 128, base_align) if a >= base_align]
    ff_aligns = [256, 128]

    if tm is None:
        preferred_tm = 1024 if big_vmem else 512
        tm = _pick_tile(M, preferred_tm, row_aligns)
        # Megacore: keep >=2 row blocks when there is enough work so both v7x
        # TensorCores get a share of the "parallel" axis.
        if M // tm < 2 and M >= 1024:
            tm2 = _pick_tile(M, M // 2, row_aligns)
            if M % tm2 == 0 and M // tm2 >= 2:
                tm = tm2
    assert M % tm == 0, "row count must be divisible by row tile"

    weight_bytes = (d_model * d_ff + d_ff * d_model + d_ff + d_model) * in_item

    def resident_need(tm_):
        x_tile = tm_ * d_model * in_item
        out_tile = tm_ * d_model * out_item
        h_tmp = tm_ * d_ff * 4  # f32 intermediate h spills to VMEM
        return 2 * (x_tile + weight_bytes) + 2 * out_tile + h_tmp

    def slabbed_need(tm_, tf_):
        x_tile = tm_ * d_model * in_item
        out_tile = tm_ * d_model * out_item
        w_slab = (d_model * tf_ + tf_ * d_model + tf_) * in_item
        acc = tm_ * d_model * 4
        h_tmp = tm_ * tf_ * 4
        return (2 * x_tile + weight_buffers * w_slab + 2 * d_model * in_item
                + 2 * out_tile + acc + h_tmp)

    # Weight-resident fast path when the full weights (double-buffered) plus the row
    # working set fit the budget: weights stream from HBM once per kernel.
    use_resident = (tf is None) and (2 * weight_bytes <= budget // 2)
    if use_resident:
        guard = 0
        while resident_need(tm) > budget and guard < 16:
            new_tm = _shrink(M, tm, row_aligns)
            if new_tm >= tm:
                use_resident = False
                break
            tm = new_tm
            guard += 1
        if use_resident and resident_need(tm) > budget:
            use_resident = False

    if not use_resident:
        if tf is None:
            # Larger slabs -> fewer accumulator read-modify-writes (esp. v5e).
            preferred_tf = 1024 if big_vmem else 512
            tf = _pick_tile(d_ff, preferred_tf, ff_aligns)
        assert d_ff % tf == 0, "d_ff must be divisible by d_ff tile"
        guard = 0
        while slabbed_need(tm, tf) > budget and guard < 32:
            new_tf = _shrink(d_ff, tf, ff_aligns)
            if new_tf < tf:
                tf = new_tf
            else:
                new_tm = _shrink(M, tm, row_aligns)
                if new_tm < tm:
                    tm = new_tm
                else:
                    break
            guard += 1

    need = resident_need(tm) if use_resident else slabbed_need(tm, tf)
    vmem_limit = int(min(budget, max(need + need // 4, 32 * 1024 * 1024)))

    # Advisory cost estimate so XLA can overlap the custom call with neighbours.
    flops = 4 * M * d_model * d_ff
    weight_streams = 1 if use_resident else (M // tm)
    bytes_accessed = int(M * d_model * in_item + weight_streams * weight_bytes
                         + M * d_model * out_item)
    cost = pl.CostEstimate(flops=flops, transcendentals=0,
                           bytes_accessed=bytes_accessed)

    x2d = x.reshape(M, d_model)
    b1_2d = b1.reshape(1, d_ff)
    b2_2d = b2.reshape(1, d_model)

    if use_resident:
        kernel = functools.partial(ffn_kernel_resident, precision=precision)
        out2d = pl.pallas_call(
            kernel,
            out_shape=jax.ShapeDtypeStruct((M, d_model), out_dtype),
            grid_spec=pltpu.PrefetchScalarGridSpec(
                num_scalar_prefetch=0,
                grid=(M // tm,),
                in_specs=[
                    pl.BlockSpec((tm, d_model), lambda i: (i, 0)),      # x row tile
                    pl.BlockSpec((d_model, d_ff), lambda i: (0, 0)),    # W1 (resident)
                    pl.BlockSpec((1, d_ff), lambda i: (0, 0)),          # b1 (resident)
                    pl.BlockSpec((d_ff, d_model), lambda i: (0, 0)),    # W2 (resident)
                    pl.BlockSpec((1, d_model), lambda i: (0, 0)),       # b2 (resident)
                ],
                out_specs=pl.BlockSpec((tm, d_model), lambda i: (i, 0)),
            ),
            compiler_params=pltpu.CompilerParams(
                dimension_semantics=("parallel",),
                vmem_limit_bytes=vmem_limit),
            cost_estimate=cost,
        )(x2d, w1, b1_2d, w2, b2_2d)
    else:
        kernel = functools.partial(ffn_kernel_slabbed, precision=precision)
        wkw = {} if weight_buffers == 2 else dict(pipeline_mode=pl.Buffered(weight_buffers))
        out2d = pl.pallas_call(
            kernel,
            out_shape=jax.ShapeDtypeStruct((M, d_model), out_dtype),
            grid_spec=pltpu.PrefetchScalarGridSpec(
                num_scalar_prefetch=0,
                grid=(M // tm, d_ff // tf),
                in_specs=[
                    pl.BlockSpec((tm, d_model), lambda i, j: (i, 0)),        # x row tile
                    pl.BlockSpec((d_model, tf), lambda i, j: (0, j), **wkw),  # W1 slab
                    pl.BlockSpec((1, tf), lambda i, j: (0, j)),               # b1 slab
                    pl.BlockSpec((tf, d_model), lambda i, j: (j, 0), **wkw),  # W2 slab
                    pl.BlockSpec((1, d_model), lambda i, j: (0, 0)),          # b2
                ],
                out_specs=pl.BlockSpec((tm, d_model), lambda i, j: (i, 0)),
                scratch_shapes=[pltpu.VMEM((tm, d_model), jnp.float32)],
            ),
            compiler_params=pltpu.CompilerParams(
                dimension_semantics=("parallel", "arbitrary"),
                vmem_limit_bytes=vmem_limit),
            cost_estimate=cost,
        )(x2d, w1, b1_2d, w2, b2_2d)

    return out2d.reshape(batch, seq, d_model)


# --------------------------------------------------------------------------------------
# Reference + self-test
# --------------------------------------------------------------------------------------

def reference(x, w1, b1, w2, b2):
    h = jnp.maximum(jnp.dot(x, w1, precision=jax.lax.Precision.HIGHEST) + b1, 0.0)
    return jnp.dot(h, w2, precision=jax.lax.Precision.HIGHEST) + b2


def _make_params(key, d_model, d_ff):
    k1, kb1, k2, kb2 = jax.random.split(key, 4)
    bound1 = 1.0 / (d_model ** 0.5)
    w1 = jax.random.uniform(k1, (d_model, d_ff), jnp.float32, -bound1, bound1)
    b1 = jax.random.uniform(kb1, (d_ff,), jnp.float32, -bound1, bound1)
    bound2 = 1.0 / (d_ff ** 0.5)
    w2 = jax.random.uniform(k2, (d_ff, d_model), jnp.float32, -bound2, bound2)
    b2 = jax.random.uniform(kb2, (d_model,), jnp.float32, -bound2, bound2)
    return w1, b1, w2, b2


if __name__ == "__main__":
    key = jax.random.PRNGKey(0)
    kx1, kp1, kx2, kp2 = jax.random.split(key, 4)

    # ---- Test 1: toy shapes (batch=2, seq=8, d_model=32, d_ff=64) -> resident path.
    batch, seq, d_model, d_ff = 2, 8, 32, 64
    x = jax.random.normal(kx1, (batch, seq, d_model), dtype=jnp.float32)
    w1, b1, w2, b2 = _make_params(kp1, d_model, d_ff)
    ref = reference(x, w1, b1, w2, b2)

    out = jax.block_until_ready(feed_forward_block(x, w1, b1, w2, b2))
    assert out.shape == (batch, seq, d_model)
    assert jnp.allclose(out, ref, atol=1e-4, rtol=1e-4), "mismatch vs reference (f32)"

    out_bf16 = jax.block_until_ready(
        feed_forward_block(x, w1, b1, w2, b2, mxu_dtype=jnp.bfloat16))
    assert out_bf16.shape == (batch, seq, d_model)
    assert jnp.max(jnp.abs(out_bf16 - ref)) < 0.5, "bf16 path diverged from reference"

    # ---- Test 2: 128-aligned dims with forced d_ff slabbing -> slabbed path.
    d_model2, d_ff2 = 128, 256
    x2 = jax.random.normal(kx2, (batch, seq, d_model2), dtype=jnp.float32)
    w1b, b1b, w2b, b2b = _make_params(kp2, d_model2, d_ff2)
    ref2 = reference(x2, w1b, b1b, w2b, b2b)

    out2 = jax.block_until_ready(
        feed_forward_block(x2, w1b, b1b, w2b, b2b, tf=128))
    assert out2.shape == (batch, seq, d_model2)
    assert jnp.allclose(out2, ref2, atol=1e-4, rtol=1e-4), "mismatch (slabbed path)"

    print("KERNEL_OK")
</pallas_src>

<mosaic_0001>
module attributes {stable_mosaic.version = 11 : i64} {
  func.func @ffn_kernel_resident(%arg0: i32, %arg1: memref<16x32xf32, #tpu.memory_space<vmem>>, %arg2: memref<32x64xf32, #tpu.memory_space<vmem>>, %arg3: memref<1x64xf32, #tpu.memory_space<vmem>>, %arg4: memref<64x32xf32, #tpu.memory_space<vmem>>, %arg5: memref<1x32xf32, #tpu.memory_space<vmem>>, %arg6: memref<16x32xf32, #tpu.memory_space<vmem>>) attributes {dimension_semantics = [#tpu.dimension_semantics<parallel>], iteration_bounds = array<i64: 1>, scalar_prefetch = 0 : i64, scratch_operands = 0 : i64, tpu.core_type = #tpu.core_type<tc>, window_params = [{transform_indices = @transform_0, window_bounds = array<i64: 16, 32>}, {pipeline_mode = #tpu.pipeline_mode<synchronous>, transform_indices = @transform_1, window_bounds = array<i64: 32, 64>}, {pipeline_mode = #tpu.pipeline_mode<synchronous>, transform_indices = @transform_2, window_bounds = array<i64: 1, 64>}, {pipeline_mode = #tpu.pipeline_mode<synchronous>, transform_indices = @transform_3, window_bounds = array<i64: 64, 32>}, {pipeline_mode = #tpu.pipeline_mode<synchronous>, transform_indices = @transform_4, window_bounds = array<i64: 1, 32>}, {transform_indices = @transform_5, window_bounds = array<i64: 16, 32>}]} {
    %c0 = arith.constant 0 : index
    %c0_0 = arith.constant 0 : index
    %0 = vector.load %arg1[%c0, %c0_0] : memref<16x32xf32, #tpu.memory_space<vmem>>, vector<16x32xf32>
    %c0_1 = arith.constant 0 : index
    %c0_2 = arith.constant 0 : index
    %1 = vector.load %arg2[%c0_1, %c0_2] : memref<32x64xf32, #tpu.memory_space<vmem>>, vector<32x64xf32>
    %cst = arith.constant dense<0.000000e+00> : vector<16x64xf32>
    %2 = tpu.matmul %0, %1, %cst {dimension_numbers = #tpu.dot_dimension_numbers<[1], [0], [0], [1], [0, 0, 1, 1], [], []>, precision = #tpu.contract_precision<fp32>} : vector<16x32xf32>, vector<32x64xf32>, vector<16x64xf32> -> vector<16x64xf32>
    %c0_3 = arith.constant 0 : index
    %c0_4 = arith.constant 0 : index
    %3 = vector.load %arg3[%c0_3, %c0_4] : memref<1x64xf32, #tpu.memory_space<vmem>>, vector<1x64xf32>
    %4 = vector.broadcast %3 : vector<1x64xf32> to vector<16x64xf32>
    %5 = arith.addf %2, %4 : vector<16x64xf32>
    %cst_5 = arith.constant 0.000000e+00 : f32
    %6 = vector.broadcast %cst_5 : f32 to vector<16x64xf32>
    %7 = arith.maximumf %5, %6 : vector<16x64xf32>
    %c0_6 = arith.constant 0 : index
    %c0_7 = arith.constant 0 : index
    %8 = vector.load %arg4[%c0_6, %c0_7] : memref<64x32xf32, #tpu.memory_space<vmem>>, vector<64x32xf32>
    %cst_8 = arith.constant dense<0.000000e+00> : vector<16x32xf32>
    %9 = tpu.matmul %7, %8, %cst_8 {dimension_numbers = #tpu.dot_dimension_numbers<[1], [0], [0], [1], [0, 0, 1, 1], [], []>, precision = #tpu.contract_precision<fp32>} : vector<16x64xf32>, vector<64x32xf32>, vector<16x32xf32> -> vector<16x32xf32>
    %c0_9 = arith.constant 0 : index
    %c0_10 = arith.constant 0 : index
    %10 = vector.load %arg5[%c0_9, %c0_10] : memref<1x32xf32, #tpu.memory_space<vmem>>, vector<1x32xf32>
    %11 = vector.broadcast %10 : vector<1x32xf32> to vector<16x32xf32>
    %12 = arith.addf %9, %11 : vector<16x32xf32>
    %c0_11 = arith.constant 0 : index
    %c0_12 = arith.constant 0 : index
    %13 = vector.load %arg6[%c0_11, %c0_12] : memref<16x32xf32, #tpu.memory_space<vmem>>, vector<16x32xf32>
    tpu.vector_store %arg6[%c0_11, %c0_12], %12 {strides = array<i32>} : memref<16x32xf32, #tpu.memory_space<vmem>>, vector<16x32xf32>,
    return
  }
  func.func @transform_0(%arg0: i32) -> (i32, i32) {
    %c0_i32 = arith.constant 0 : i32
    %c0_i32_0 = arith.constant 0 : i32
    return %arg0, %c0_i32 : i32, i32
  }
  func.func @transform_1(%arg0: i32) -> (i32, i32) {
    %c0_i32 = arith.constant 0 : i32
    %c0_i32_0 = arith.constant 0 : i32
    %c0_i32_1 = arith.constant 0 : i32
    return %c0_i32, %c0_i32_0 : i32, i32
  }
  func.func @transform_2(%arg0: i32) -> (i32, i32) {
    %c0_i32 = arith.constant 0 : i32
    %c0_i32_0 = arith.constant 0 : i32
    %c0_i32_1 = arith.constant 0 : i32
    return %c0_i32, %c0_i32_0 : i32, i32
  }
  func.func @transform_3(%arg0: i32) -> (i32, i32) {
    %c0_i32 = arith.constant 0 : i32
    %c0_i32_0 = arith.constant 0 : i32
    %c0_i32_1 = arith.constant 0 : i32
    return %c0_i32, %c0_i32_0 : i32, i32
  }
  func.func @transform_4(%arg0: i32) -> (i32, i32) {
    %c0_i32 = arith.constant 0 : i32
    %c0_i32_0 = arith.constant 0 : i32
    %c0_i32_1 = arith.constant 0 : i32
    return %c0_i32, %c0_i32_0 : i32, i32
  }
  func.func @transform_5(%arg0: i32) -> (i32, i32) {
    %c0_i32 = arith.constant 0 : i32
    %c0_i32_0 = arith.constant 0 : i32
    return %arg0, %c0_i32 : i32, i32
  }
}

</mosaic_0001>

<llo_original>
// kernel: tpu_custom_call.1
$region0: #{tpu_custom_call.1}
  #allocation0 [shape = 'u32[]', space=smem, size = 0x4, offset = 0x4, fixed_abs, tag = 'smem constant byte address 0x4 - core index']
  #allocation1 [shape = 'u32[72,128]{1,0:T(1,128)}', space=vmem, size = 0x9000, scoped, tag = 'internal scratch']
  %s0 = inlined_call_operand.vmem [shape: f32[16,32], index: 0, kind: input, shape index: {}]
  %s1 = inlined_call_operand.vmem [shape: f32[32,64], index: 1, kind: input, shape index: {}]
  %s2 = inlined_call_operand.vmem [shape: f32[1,64], index: 2, kind: input, shape index: {}]
  %s3 = inlined_call_operand.vmem [shape: f32[64,32], index: 3, kind: input, shape index: {}]
  %s4 = inlined_call_operand.vmem [shape: f32[1,32], index: 4, kind: input, shape index: {}]
  %s5 = inlined_call_operand.hbm [shape: f32[16,32], index: 5, kind: output, shape index: {}]
  %s6 = sld [smem:[#allocation0]]
  $region30: #{tpu_custom_call.1} parent=0
    _
  %s8 = ssub.s32 1, %s6
  %s9 = scalar_select 0, %s8, %s6
  $region1: #{tpu_custom_call.1} parent=0
    #allocation2 [shape = 'u8[8192]{0}', space=vmem, size = 0x2000, scoped, tag = 'output window, operand 0, single buffered']
    #allocation3 [shape = 's32[1]{0}', space=sflag, size = 0x4, scoped, tag = 'scoped memory for tpu_custom_call.1']
    %10 = vsyncpa [#allocation3], 0
    // Predicated region
    $region2: #{tpu_custom_call.1} parent=1 // pred_check
      _
    $region3: #{tpu_custom_call.1} parent=1 // pred_check_branch
      %12 = sbr.rel (0) target = $region5
    $region4: #{tpu_custom_call.1} parent=1 // pred_region
      _
    $region5: #{tpu_custom_call.1} parent=1 // pred_fallthru
      _
    // Predicated region
    $region6: #{tpu_custom_call.1} parent=1 // pred_check
      _
    $region7: #{tpu_custom_call.1} parent=1 // pred_check_branch
      %14 = sbr.rel (0) target = $region9
    $region8: #{tpu_custom_call.1} parent=1 // pred_region
      _
    $region9: #{tpu_custom_call.1} parent=1 // pred_fallthru
      _
    // Predicated region
    $region10: #{tpu_custom_call.1} parent=1 // pred_check
      _
    $region11: #{tpu_custom_call.1} parent=1 // pred_check_branch
      %16 = sbr.rel (0) target = $region13
    $region12: #{tpu_custom_call.1} parent=1 // pred_region
      _
    $region13: #{tpu_custom_call.1} parent=1 // pred_fallthru
      _
    // Predicated region
    $region14: #{tpu_custom_call.1} parent=1 // pred_check
      _
    $region15: #{tpu_custom_call.1} parent=1 // pred_check_branch
      %18 = sbr.rel (0) target = $region17
    $region16: #{tpu_custom_call.1} parent=1 // pred_region
      _
    $region17: #{tpu_custom_call.1} parent=1 // pred_fallthru
      _
    // Predicated region
    $region18: #{tpu_custom_call.1} parent=1 // pred_check
      _
    $region19: #{tpu_custom_call.1} parent=1 // pred_check_branch
      %20 = sbr.rel (0) target = $region21
    $region20: #{tpu_custom_call.1} parent=1 // pred_region
      _
    $region21: #{tpu_custom_call.1} parent=1 // pred_fallthru
      _
    %v21 = vld [vmem:[%s0] sm:$0xff]
    %v22 = vld [vmem:[%s0 + $0x8] sm:$0xff]
    %v23 = vld [vmem:[%s1] sm:$0xff]
    %v24 = vld [vmem:[%s1 + $0x8] sm:$0xff]
    %v25 = vld [vmem:[%s1 + $0x10] sm:$0xff]
    %v26 = vld [vmem:[%s1 + $0x18] sm:$0xff]
    %v27 = vld [vmem:[%s2] sm:$0x1]
    %v29 = vperm.slane %v27, 0
    %vm31 = vcmask 261120
    %v33 = vsel %vm31, %v21, 0
    %v36 = vsel %vm31, %v22, 0
    %38 = vmatpush.msra.mxu0 0.0
    %39 = vmatpush.msra.mxu0 0.0
    %40 = vmatpush.msra.mxu0 0.0
    %41 = vmatpush.msra.mxu0 0.0
    %42 = vmatpush.msra.mxu0 0.0
    %43 = vmatpush.msra.mxu0 0.0
    %44 = vmatpush.msra.mxu0 0.0
    %45 = vmatpush.msra.mxu0 0.0
    %46 = vmatpush.msra.mxu0 0.0
    %47 = vmatpush.msra.mxu0 0.0
    %48 = vmatpush.msra.mxu0 0.0
    %49 = vmatpush.msra.mxu0 0.0
    %v50 = vand.u32 %v26, 4294901760
    %51 = vmatpush.msra.mxu0 %v50
    %v52 = vand.u32 %v25, 4294901760
    %53 = vmatpush.msra.mxu0 %v52
    %v54 = vand.u32 %v24, 4294901760
    %55 = vmatpush.msra.mxu0 %v54
    %v56 = vand.u32 %v23, 4294901760
    %57 = vmatpush.msra.mxu0 %v56
    %v58 = vand.u32 %v33, 4294901760
    %v59 = vsub.f32 %v33, %v58
    %v60 = vand.u32 %v59, 4294901760
    %v61 = vsub.f32 %v59, %v60
    %v62 = vand.u32 %v61, 4294901760
    %63 = vmatmul.f32.gmra.mxu0 %v62
    %v64 = vpop.f32.mrf.mxu0
    %v65 = vadd.f32 %v29, %v64
    %v66 = vand.u32 %v36, 4294901760
    %v67 = vsub.f32 %v36, %v66
    %v68 = vand.u32 %v67, 4294901760
    %v69 = vsub.f32 %v67, %v68
    %v70 = vand.u32 %v69, 4294901760
    %71 = vmatmul.f32.gmra.mxu0 %v70
    %v72 = vpop.f32.mrf.mxu0
    %v73 = vadd.f32 %v29, %v72
    %74 = vdwg.mxu0
    %75 = vmatpush.msra.mxu0 0.0
    %76 = vmatpush.msra.mxu0 0.0
    %77 = vmatpush.msra.mxu0 0.0
    %78 = vmatpush.msra.mxu0 0.0
    %79 = vmatpush.msra.mxu0 0.0
    %80 = vmatpush.msra.mxu0 0.0
    %81 = vmatpush.msra.mxu0 0.0
    %82 = vmatpush.msra.mxu0 0.0
    %83 = vmatpush.msra.mxu0 0.0
    %84 = vmatpush.msra.mxu0 0.0
    %85 = vmatpush.msra.mxu0 0.0
    %86 = vmatpush.msra.mxu0 0.0
    %v87 = vand.u32 %v26, 4294901760
    %v88 = vsub.f32 %v26, %v87
    %v89 = vand.u32 %v88, 4294901760
    %v90 = vsub.f32 %v88, %v89
    %v91 = vand.u32 %v90, 4294901760
    %92 = vmatpush.msra.mxu0 %v91
    %v93 = vand.u32 %v25, 4294901760
    %v94 = vsub.f32 %v25, %v93
    %v95 = vand.u32 %v94, 4294901760
    %v96 = vsub.f32 %v94, %v95
    %v97 = vand.u32 %v96, 4294901760
    %98 = vmatpush.msra.mxu0 %v97
    %v99 = vand.u32 %v24, 4294901760
    %v100 = vsub.f32 %v24, %v99
    %v101 = vand.u32 %v100, 4294901760
    %v102 = vsub.f32 %v100, %v101
    %v103 = vand.u32 %v102, 4294901760
    %104 = vmatpush.msra.mxu0 %v103
    %v105 = vand.u32 %v23, 4294901760
    %v106 = vsub.f32 %v23, %v105
    %v107 = vand.u32 %v106, 4294901760
    %v108 = vsub.f32 %v106, %v107
    %v109 = vand.u32 %v108, 4294901760
    %110 = vmatpush.msra.mxu0 %v109
    %v111 = vand.u32 %v33, 4294901760
    %112 = vmatmul.f32.gmra.mxu0 %v111
    %v113 = vpop.f32.mrf.mxu0
    %v114 = vadd.f32 %v65, %v113
    %v115 = vand.u32 %v36, 4294901760
    %116 = vmatmul.f32.gmra.mxu0 %v115
    %v117 = vpop.f32.mrf.mxu0
    %v118 = vadd.f32 %v73, %v117
    %119 = vdwg.mxu0
    %120 = vmatpush.msra.mxu0 0.0
    %121 = vmatpush.msra.mxu0 0.0
    %122 = vmatpush.msra.mxu0 0.0
    %123 = vmatpush.msra.mxu0 0.0
    %124 = vmatpush.msra.mxu0 0.0
    %125 = vmatpush.msra.mxu0 0.0
    %126 = vmatpush.msra.mxu0 0.0
    %127 = vmatpush.msra.mxu0 0.0
    %128 = vmatpush.msra.mxu0 0.0
    %129 = vmatpush.msra.mxu0 0.0
    %130 = vmatpush.msra.mxu0 0.0
    %131 = vmatpush.msra.mxu0 0.0
    %v132 = vand.u32 %v26, 4294901760
    %v133 = vsub.f32 %v26, %v132
    %134 = vmatpush.msra.mxu0 %v133
    %v135 = vand.u32 %v25, 4294901760
    %v136 = vsub.f32 %v25, %v135
    %137 = vmatpush.msra.mxu0 %v136
    %v138 = vand.u32 %v24, 4294901760
    %v139 = vsub.f32 %v24, %v138
    %140 = vmatpush.msra.mxu0 %v139
    %v141 = vand.u32 %v23, 4294901760
    %v142 = vsub.f32 %v23, %v141
    %143 = vmatpush.msra.mxu0 %v142
    %v144 = vand.u32 %v33, 4294901760
    %v145 = vsub.f32 %v33, %v144
    %146 = vmatmul.f32.gmra.mxu0 %v145
    %v147 = vpop.f32.mrf.mxu0
    %v148 = vadd.f32 %v114, %v147
    %v149 = vand.u32 %v36, 4294901760
    %v150 = vsub.f32 %v36, %v149
    %151 = vmatmul.f32.gmra.mxu0 %v150
    %v152 = vpop.f32.mrf.mxu0
    %v153 = vadd.f32 %v118, %v152
    %154 = vdwg.mxu0
    %155 = vmatpush.msra.mxu0 0.0
    %156 = vmatpush.msra.mxu0 0.0
    %157 = vmatpush.msra.mxu0 0.0
    %158 = vmatpush.msra.mxu0 0.0
    %159 = vmatpush.msra.mxu0 0.0
    %160 = vmatpush.msra.mxu0 0.0
    %161 = vmatpush.msra.mxu0 0.0
    %162 = vmatpush.msra.mxu0 0.0
    %163 = vmatpush.msra.mxu0 0.0
    %164 = vmatpush.msra.mxu0 0.0
    %165 = vmatpush.msra.mxu0 0.0
    %166 = vmatpush.msra.mxu0 0.0
    %v167 = vand.u32 %v26, 4294901760
    %168 = vmatpush.msra.mxu0 %v167
    %v169 = vand.u32 %v25, 4294901760
    %170 = vmatpush.msra.mxu0 %v169
    %v171 = vand.u32 %v24, 4294901760
    %172 = vmatpush.msra.mxu0 %v171
    %v173 = vand.u32 %v23, 4294901760
    %174 = vmatpush.msra.mxu0 %v173
    %v175 = vand.u32 %v33, 4294901760
    %v176 = vsub.f32 %v33, %v175
    %v177 = vand.u32 %v176, 4294901760
    %178 = vmatmul.f32.gmra.mxu0 %v177
    %v179 = vpop.f32.mrf.mxu0
    %v180 = vadd.f32 %v148, %v179
    %v181 = vand.u32 %v36, 4294901760
    %v182 = vsub.f32 %v36, %v181
    %v183 = vand.u32 %v182, 4294901760
    %184 = vmatmul.f32.gmra.mxu0 %v183
    %v185 = vpop.f32.mrf.mxu0
    %v186 = vadd.f32 %v153, %v185
    %187 = vdwg.mxu0
    %188 = vmatpush.msra.mxu0 0.0
    %189 = vmatpush.msra.mxu0 0.0
    %190 = vmatpush.msra.mxu0 0.0
    %191 = vmatpush.msra.mxu0 0.0
    %192 = vmatpush.msra.mxu0 0.0
    %193 = vmatpush.msra.mxu0 0.0
    %194 = vmatpush.msra.mxu0 0.0
    %195 = vmatpush.msra.mxu0 0.0
    %196 = vmatpush.msra.mxu0 0.0
    %197 = vmatpush.msra.mxu0 0.0
    %198 = vmatpush.msra.mxu0 0.0
    %199 = vmatpush.msra.mxu0 0.0
    %v200 = vand.u32 %v26, 4294901760
    %v201 = vsub.f32 %v26, %v200
    %v202 = vand.u32 %v201, 4294901760
    %203 = vmatpush.msra.mxu0 %v202
    %v204 = vand.u32 %v25, 4294901760
    %v205 = vsub.f32 %v25, %v204
    %v206 = vand.u32 %v205, 4294901760
    %207 = vmatpush.msra.mxu0 %v206
    %v208 = vand.u32 %v24, 4294901760
    %v209 = vsub.f32 %v24, %v208
    %v210 = vand.u32 %v209, 4294901760
    %211 = vmatpush.msra.mxu0 %v210
    %v212 = vand.u32 %v23, 4294901760
    %v213 = vsub.f32 %v23, %v212
    %v214 = vand.u32 %v213, 4294901760
    %215 = vmatpush.msra.mxu0 %v214
    %v216 = vand.u32 %v33, 4294901760
    %217 = vmatmul.f32.gmra.mxu0 %v216
    %v218 = vpop.f32.mrf.mxu0
    %v219 = vadd.f32 %v180, %v218
    %v220 = vand.u32 %v36, 4294901760
    %221 = vmatmul.f32.gmra.mxu0 %v220
    %v222 = vpop.f32.mrf.mxu0
    %v223 = vadd.f32 %v186, %v222
    %224 = vdwg.mxu0
    %225 = vmatpush.msra.mxu0 0.0
    %226 = vmatpush.msra.mxu0 0.0
    %227 = vmatpush.msra.mxu0 0.0
    %228 = vmatpush.msra.mxu0 0.0
    %229 = vmatpush.msra.mxu0 0.0
    %230 = vmatpush.msra.mxu0 0.0
    %231 = vmatpush.msra.mxu0 0.0
    %232 = vmatpush.msra.mxu0 0.0
    %233 = vmatpush.msra.mxu0 0.0
    %234 = vmatpush.msra.mxu0 0.0
    %235 = vmatpush.msra.mxu0 0.0
    %236 = vmatpush.msra.mxu0 0.0
    %v237 = vand.u32 %v26, 4294901760
    %238 = vmatpush.msra.mxu0 %v237
    %v239 = vand.u32 %v25, 4294901760
    %240 = vmatpush.msra.mxu0 %v239
    %v241 = vand.u32 %v24, 4294901760
    %242 = vmatpush.msra.mxu0 %v241
    %v243 = vand.u32 %v23, 4294901760
    %244 = vmatpush.msra.mxu0 %v243
    %v245 = vand.u32 %v33, 4294901760
    %246 = vmatmul.f32.gmra.mxu0 %v245
    %v247 = vpop.f32.mrf.mxu0
    %v248 = vadd.f32 %v219, %v247
    %v249 = vand.u32 %v36, 4294901760
    %250 = vmatmul.f32.gmra.mxu0 %v249
    %v251 = vpop.f32.mrf.mxu0
    %v252 = vadd.f32 %v223, %v251
    %253 = vdwg.mxu0
    %v254 = vmax.f32 %v248, 0.0
    %v255 = vmax.f32 %v252, 0.0
    %v256 = vld [vmem:[%s3] sm:$0xff]
    %v257 = vld [vmem:[%s3 + $0x8] sm:$0xff]
    %v258 = vld [vmem:[%s3 + $0x10] sm:$0xff]
    %v259 = vld [vmem:[%s3 + $0x18] sm:$0xff]
    %v260 = vld [vmem:[%s3 + $0x20] sm:$0xff]
    %v261 = vld [vmem:[%s3 + $0x28] sm:$0xff]
    %v262 = vld [vmem:[%s3 + $0x30] sm:$0xff]
    %v263 = vld [vmem:[%s3 + $0x38] sm:$0xff]
    %v264 = vld [vmem:[%s4] sm:$0x1]
    %v266 = vperm.slane %v264, 0
    %vm268 = vcmask 523264
    %v270 = vsel %vm268, %v254, 0
    %v273 = vsel %vm268, %v255, 0
    %275 = vmatpush.msra.mxu0 0.0
    %276 = vmatpush.msra.mxu0 0.0
    %277 = vmatpush.msra.mxu0 0.0
    %278 = vmatpush.msra.mxu0 0.0
    %279 = vmatpush.msra.mxu0 0.0
    %280 = vmatpush.msra.mxu0 0.0
    %281 = vmatpush.msra.mxu0 0.0
    %282 = vmatpush.msra.mxu0 0.0
    %v283 = vand.u32 %v263, 4294901760
    %284 = vmatpush.msra.mxu0 %v283
    %v285 = vand.u32 %v262, 4294901760
    %286 = vmatpush.msra.mxu0 %v285
    %v287 = vand.u32 %v261, 4294901760
    %288 = vmatpush.msra.mxu0 %v287
    %v289 = vand.u32 %v260, 4294901760
    %290 = vmatpush.msra.mxu0 %v289
    %v291 = vand.u32 %v259, 4294901760
    %292 = vmatpush.msra.mxu0 %v291
    %v293 = vand.u32 %v258, 4294901760
    %294 = vmatpush.msra.mxu0 %v293
    %v295 = vand.u32 %v257, 4294901760
    %296 = vmatpush.msra.mxu0 %v295
    %v297 = vand.u32 %v256, 4294901760
    %298 = vmatpush.msra.mxu0 %v297
    %v299 = vand.u32 %v270, 4294901760
    %v300 = vsub.f32 %v270, %v299
    %v301 = vand.u32 %v300, 4294901760
    %v302 = vsub.f32 %v300, %v301
    %v303 = vand.u32 %v302, 4294901760
    %304 = vmatmul.f32.gmra.mxu0 %v303
    %v305 = vpop.f32.mrf.mxu0
    %v306 = vadd.f32 %v266, %v305
    %v307 = vand.u32 %v273, 4294901760
    %v308 = vsub.f32 %v273, %v307
    %v309 = vand.u32 %v308, 4294901760
    %v310 = vsub.f32 %v308, %v309
    %v311 = vand.u32 %v310, 4294901760
    %312 = vmatmul.f32.gmra.mxu0 %v311
    %v313 = vpop.f32.mrf.mxu0
    %v314 = vadd.f32 %v266, %v313
    %315 = vdwg.mxu0
    %316 = vmatpush.msra.mxu0 0.0
    %317 = vmatpush.msra.mxu0 0.0
    %318 = vmatpush.msra.mxu0 0.0
    %319 = vmatpush.msra.mxu0 0.0
    %320 = vmatpush.msra.mxu0 0.0
    %321 = vmatpush.msra.mxu0 0.0
    %322 = vmatpush.msra.mxu0 0.0
    %323 = vmatpush.msra.mxu0 0.0
    %v324 = vand.u32 %v263, 4294901760
    %v325 = vsub.f32 %v263, %v324
    %v326 = vand.u32 %v325, 4294901760
    %v327 = vsub.f32 %v325, %v326
    %v328 = vand.u32 %v327, 4294901760
    %329 = vmatpush.msra.mxu0 %v328
    %v330 = vand.u32 %v262, 4294901760
    %v331 = vsub.f32 %v262, %v330
    %v332 = vand.u32 %v331, 4294901760
    %v333 = vsub.f32 %v331, %v332
    %v334 = vand.u32 %v333, 4294901760
    %335 = vmatpush.msra.mxu0 %v334
    %v336 = vand.u32 %v261, 4294901760
    %v337 = vsub.f32 %v261, %v336
    %v338 = vand.u32 %v337, 4294901760
    %v339 = vsub.f32 %v337, %v338
    %v340 = vand.u32 %v339, 4294901760
    %341 = vmatpush.msra.mxu0 %v340
    %v342 = vand.u32 %v260, 4294901760
    %v343 = vsub.f32 %v260, %v342
    %v344 = vand.u32 %v343, 4294901760
    %v345 = vsub.f32 %v343, %v344
    %v346 = vand.u32 %v345, 4294901760
    %347 = vmatpush.msra.mxu0 %v346
    %v348 = vand.u32 %v259, 4294901760
    %v349 = vsub.f32 %v259, %v348
    %v350 = vand.u32 %v349, 4294901760
    %v351 = vsub.f32 %v349, %v350
    %v352 = vand.u32 %v351, 4294901760
    %353 = vmatpush.msra.mxu0 %v352
    %v354 = vand.u32 %v258, 4294901760
    %v355 = vsub.f32 %v258, %v354
    %v356 = vand.u32 %v355, 4294901760
    %v357 = vsub.f32 %v355, %v356
    %v358 = vand.u32 %v357, 4294901760
    %359 = vmatpush.msra.mxu0 %v358
    %v360 = vand.u32 %v257, 4294901760
    %v361 = vsub.f32 %v257, %v360
    %v362 = vand.u32 %v361, 4294901760
    %v363 = vsub.f32 %v361, %v362
    %v364 = vand.u32 %v363, 4294901760
    %365 = vmatpush.msra.mxu0 %v364
    %v366 = vand.u32 %v256, 4294901760
    %v367 = vsub.f32 %v256, %v366
    %v368 = vand.u32 %v367, 4294901760
    %v369 = vsub.f32 %v367, %v368
    %v370 = vand.u32 %v369, 4294901760
    %371 = vmatpush.msra.mxu0 %v370
    %v372 = vand.u32 %v270, 4294901760
    %373 = vmatmul.f32.gmra.mxu0 %v372
    %v374 = vpop.f32.mrf.mxu0
    %v375 = vadd.f32 %v306, %v374
    %v376 = vand.u32 %v273, 4294901760
    %377 = vmatmul.f32.gmra.mxu0 %v376
    %v378 = vpop.f32.mrf.mxu0
    %v379 = vadd.f32 %v314, %v378
    %380 = vdwg.mxu0
    %381 = vmatpush.msra.mxu0 0.0
    %382 = vmatpush.msra.mxu0 0.0
    %383 = vmatpush.msra.mxu0 0.0
    %384 = vmatpush.msra.mxu0 0.0
    %385 = vmatpush.msra.mxu0 0.0
    %386 = vmatpush.msra.mxu0 0.0
    %387 = vmatpush.msra.mxu0 0.0
    %388 = vmatpush.msra.mxu0 0.0
    %v389 = vand.u32 %v263, 4294901760
    %v390 = vsub.f32 %v263, %v389
    %391 = vmatpush.msra.mxu0 %v390
    %v392 = vand.u32 %v262, 4294901760
    %v393 = vsub.f32 %v262, %v392
    %394 = vmatpush.msra.mxu0 %v393
    %v395 = vand.u32 %v261, 4294901760
    %v396 = vsub.f32 %v261, %v395
    %397 = vmatpush.msra.mxu0 %v396
    %v398 = vand.u32 %v260, 4294901760
    %v399 = vsub.f32 %v260, %v398
    %400 = vmatpush.msra.mxu0 %v399
    %v401 = vand.u32 %v259, 4294901760
    %v402 = vsub.f32 %v259, %v401
    %403 = vmatpush.msra.mxu0 %v402
    %v404 = vand.u32 %v258, 4294901760
    %v405 = vsub.f32 %v258, %v404
    %406 = vmatpush.msra.mxu0 %v405
    %v407 = vand.u32 %v257, 4294901760
    %v408 = vsub.f32 %v257, %v407
    %409 = vmatpush.msra.mxu0 %v408
    %v410 = vand.u32 %v256, 4294901760
    %v411 = vsub.f32 %v256, %v410
    %412 = vmatpush.msra.mxu0 %v411
    %v413 = vand.u32 %v270, 4294901760
    %v414 = vsub.f32 %v270, %v413
    %415 = vmatmul.f32.gmra.mxu0 %v414
    %v416 = vpop.f32.mrf.mxu0
    %v417 = vadd.f32 %v375, %v416
    %v418 = vand.u32 %v273, 4294901760
    %v419 = vsub.f32 %v273, %v418
    %420 = vmatmul.f32.gmra.mxu0 %v419
    %v421 = vpop.f32.mrf.mxu0
    %v422 = vadd.f32 %v379, %v421
    %423 = vdwg.mxu0
    %424 = vmatpush.msra.mxu0 0.0
    %425 = vmatpush.msra.mxu0 0.0
    %426 = vmatpush.msra.mxu0 0.0
    %427 = vmatpush.msra.mxu0 0.0
    %428 = vmatpush.msra.mxu0 0.0
    %429 = vmatpush.msra.mxu0 0.0
    %430 = vmatpush.msra.mxu0 0.0
    %431 = vmatpush.msra.mxu0 0.0
    %v432 = vand.u32 %v263, 4294901760
    %433 = vmatpush.msra.mxu0 %v432
    %v434 = vand.u32 %v262, 4294901760
    %435 = vmatpush.msra.mxu0 %v434
    %v436 = vand.u32 %v261, 4294901760
    %437 = vmatpush.msra.mxu0 %v436
    %v438 = vand.u32 %v260, 4294901760
    %439 = vmatpush.msra.mxu0 %v438
    %v440 = vand.u32 %v259, 4294901760
    %441 = vmatpush.msra.mxu0 %v440
    %v442 = vand.u32 %v258, 4294901760
    %443 = vmatpush.msra.mxu0 %v442
    %v444 = vand.u32 %v257, 4294901760
    %445 = vmatpush.msra.mxu0 %v444
    %v446 = vand.u32 %v256, 4294901760
    %447 = vmatpush.msra.mxu0 %v446
    %v448 = vand.u32 %v270, 4294901760
    %v449 = vsub.f32 %v270, %v448
    %v450 = vand.u32 %v449, 4294901760
    %451 = vmatmul.f32.gmra.mxu0 %v450
    %v452 = vpop.f32.mrf.mxu0
    %v453 = vadd.f32 %v417, %v452
    %v454 = vand.u32 %v273, 4294901760
    %v455 = vsub.f32 %v273, %v454
    %v456 = vand.u32 %v455, 4294901760
    %457 = vmatmul.f32.gmra.mxu0 %v456
    %v458 = vpop.f32.mrf.mxu0
    %v459 = vadd.f32 %v422, %v458
    %460 = vdwg.mxu0
    %461 = vmatpush.msra.mxu0 0.0
    %462 = vmatpush.msra.mxu0 0.0
    %463 = vmatpush.msra.mxu0 0.0
    %464 = vmatpush.msra.mxu0 0.0
    %465 = vmatpush.msra.mxu0 0.0
    %466 = vmatpush.msra.mxu0 0.0
    %467 = vmatpush.msra.mxu0 0.0
    %468 = vmatpush.msra.mxu0 0.0
    %v469 = vand.u32 %v263, 4294901760
    %v470 = vsub.f32 %v263, %v469
    %v471 = vand.u32 %v470, 4294901760
    %472 = vmatpush.msra.mxu0 %v471
    %v473 = vand.u32 %v262, 4294901760
    %v474 = vsub.f32 %v262, %v473
    %v475 = vand.u32 %v474, 4294901760
    %476 = vmatpush.msra.mxu0 %v475
    %v477 = vand.u32 %v261, 4294901760
    %v478 = vsub.f32 %v261, %v477
    %v479 = vand.u32 %v478, 4294901760
    %480 = vmatpush.msra.mxu0 %v479
    %v481 = vand.u32 %v260, 4294901760
    %v482 = vsub.f32 %v260, %v481
    %v483 = vand.u32 %v482, 4294901760
    %484 = vmatpush.msra.mxu0 %v483
    %v485 = vand.u32 %v259, 4294901760
    %v486 = vsub.f32 %v259, %v485
    %v487 = vand.u32 %v486, 4294901760
    %488 = vmatpush.msra.mxu0 %v487
    %v489 = vand.u32 %v258, 4294901760
    %v490 = vsub.f32 %v258, %v489
    %v491 = vand.u32 %v490, 4294901760
    %492 = vmatpush.msra.mxu0 %v491
    %v493 = vand.u32 %v257, 4294901760
    %v494 = vsub.f32 %v257, %v493
    %v495 = vand.u32 %v494, 4294901760
    %496 = vmatpush.msra.mxu0 %v495
    %v497 = vand.u32 %v256, 4294901760
    %v498 = vsub.f32 %v256, %v497
    %v499 = vand.u32 %v498, 4294901760
    %500 = vmatpush.msra.mxu0 %v499
    %v501 = vand.u32 %v270, 4294901760
    %502 = vmatmul.f32.gmra.mxu0 %v501
    %v503 = vpop.f32.mrf.mxu0
    %v504 = vadd.f32 %v453, %v503
    %v505 = vand.u32 %v273, 4294901760
    %506 = vmatmul.f32.gmra.mxu0 %v505
    %v507 = vpop.f32.mrf.mxu0
    %v508 = vadd.f32 %v459, %v507
    %509 = vdwg.mxu0
    %510 = vmatpush.msra.mxu0 0.0
    %511 = vmatpush.msra.mxu0 0.0
    %512 = vmatpush.msra.mxu0 0.0
    %513 = vmatpush.msra.mxu0 0.0
    %514 = vmatpush.msra.mxu0 0.0
    %515 = vmatpush.msra.mxu0 0.0
    %516 = vmatpush.msra.mxu0 0.0
    %517 = vmatpush.msra.mxu0 0.0
    %v518 = vand.u32 %v263, 4294901760
    %519 = vmatpush.msra.mxu0 %v518
    %v520 = vand.u32 %v262, 4294901760
    %521 = vmatpush.msra.mxu0 %v520
    %v522 = vand.u32 %v261, 4294901760
    %523 = vmatpush.msra.mxu0 %v522
    %v524 = vand.u32 %v260, 4294901760
    %525 = vmatpush.msra.mxu0 %v524
    %v526 = vand.u32 %v259, 4294901760
    %527 = vmatpush.msra.mxu0 %v526
    %v528 = vand.u32 %v258, 4294901760
    %529 = vmatpush.msra.mxu0 %v528
    %v530 = vand.u32 %v257, 4294901760
    %531 = vmatpush.msra.mxu0 %v530
    %v532 = vand.u32 %v256, 4294901760
    %533 = vmatpush.msra.mxu0 %v532
    %v534 = vand.u32 %v270, 4294901760
    %535 = vmatmul.f32.gmra.mxu0 %v534
    %v536 = vpop.f32.mrf.mxu0
    %v537 = vadd.f32 %v504, %v536
    %v538 = vand.u32 %v273, 4294901760
    %539 = vmatmul.f32.gmra.mxu0 %v538
    %v540 = vpop.f32.mrf.mxu0
    %v541 = vadd.f32 %v508, %v540
    %542 = vdwg.mxu0
    %543 = vst.msk [vmem:[#allocation2] sm:$0xff] %vm31, %v537
    %544 = vst.msk [vmem:[#allocation2 + $0x8] sm:$0xff] %vm31, %v541
    // Predicated region
    $region22: #{tpu_custom_call.1} parent=1 // pred_check
      _
    $region23: #{tpu_custom_call.1} parent=1 // pred_check_branch
      %546 = sbr.rel (0) target = $region25
    $region24: #{tpu_custom_call.1} parent=1 // pred_region
      %548 = vsyncadd [#allocation3], 0
      %s549 = sshll.u32 [#allocation2], 4
      %s550 = int_to_ptr.vmem [resolvable:$true] %s549
      %s551 = sshll.u32 %s5, 4
      %s552 = int_to_ptr.hbm [resolvable:$true] %s551
      %557 = dma.vmem_to_hbm [thread:$0]  %s550, 256, %s552, [#allocation3], 128, 128, 8
    $region25: #{tpu_custom_call.1} parent=1 // pred_fallthru
      _
    // Predicated region
    $region26: #{tpu_custom_call.1} parent=1 // pred_check
      _
    $region27: #{tpu_custom_call.1} parent=1 // pred_check_branch
      %559 = sbr.rel (0) target = $region29
    $region28: #{tpu_custom_call.1} parent=1 // pred_region
      %561 = dma.done [#allocation3], 256
    $region29: #{tpu_custom_call.1} parent=1 // pred_fallthru
      _
    %562 = vsyncpa [#allocation3], 1

</llo_original>
